<compile_context>
chip_gen: v5e
topology: v5e:2x2
jax: 0.10.0
libtpu: 0.0.40
codegen_flags: <defaults>
</compile_context>

<pallas_src>
import jax
import jax.numpy as jnp
from jax.experimental import pallas as pl
from jax.experimental.pallas import tpu as pltpu


def _round_up(x, m):
    return (x + m - 1) // m * m


def classifier_head_kernel(x_ref, w1_ref, b1_ref, w2_ref, b2_ref, out_ref, acc_ref):
    """Fused fc1 -> relu -> fc2 over a (usually length-1) vocab-tiled grid.

    Grid axis 0 walks the vocab (reduction) dimension in large tiles.  A tiny
    (B, 32) f32 accumulator lives in VMEM scratch; on the last step we add
    bias1, apply ReLU, reduce against the fc2 row on the VPU, add bias2 and
    store the (B, 1) output.
    """
    k = pl.program_id(0)

    @pl.when(k == 0)
    def _():
        acc_ref[...] = jnp.zeros_like(acc_ref)

    # Partial fc1: (B, tk) @ (tk, 32), bf16 operands, f32 accumulation on MXU.
    acc_ref[...] += jnp.dot(
        x_ref[...], w1_ref[...], preferred_element_type=jnp.float32
    )

    @pl.when(k == pl.num_programs(0) - 1)
    def _():
        h = jnp.maximum(acc_ref[...] + b1_ref[...], 0.0)            # fc1 bias + ReLU
        # fc2 as multiply + lane reduce (avoids a 99%-empty (32,1) MXU matmul).
        y = jnp.sum(h * w2_ref[...], axis=-1, keepdims=True)
        out_ref[...] = (y + b2_ref[...]).astype(out_ref.dtype)      # fc2 bias


def classifier_head(opt_out, w1, b1, w2, b2, *, max_tk=16384):
    """opt_out: (B, V) f32; w1: (V, 32); b1: (32,); w2: (32, 1); b2: (1,)."""
    B, V = opt_out.shape
    H = w1.shape[1]

    # Tile choice: one whole (lane-aligned) vocab block if it fits the cap,
    # otherwise stream in max_tk-wide tiles.  max_tk must be a multiple of 128.
    vp0 = _round_up(V, 128)
    tk = vp0 if vp0 <= max_tk else max_tk
    Vp = _round_up(V, tk)

    # Zero-pad the vocab dimension (exact: fc1 is linear, zeros contribute 0).
    if Vp != V:
        opt_out = jnp.pad(opt_out, ((0, 0), (0, Vp - V)))
        w1 = jnp.pad(w1, ((0, Vp - V), (0, 0)))

    # Stream the dominant bytes (w1) and the activation tile as bf16; the
    # accumulate stays f32 inside the kernel.
    x_bf = opt_out.astype(jnp.bfloat16)
    w1_bf = w1.astype(jnp.bfloat16)
    b1_2d = b1.reshape(1, H).astype(jnp.float32)
    w2_row = jnp.reshape(w2, (1, H)).astype(jnp.float32)   # (32,1) -> (1,32) row
    b2_2d = b2.reshape(1, 1).astype(jnp.float32)

    n_steps = Vp // tk

    # VMEM budget (double-buffered bf16 x / w1 tiles + tiny residents) is a
    # few MB at most; 32 MiB scoped limit is safe on v5e/v6e/v7x.
    vmem_limit = 32 * 1024 * 1024

    return pl.pallas_call(
        classifier_head_kernel,
        out_shape=jax.ShapeDtypeStruct((B, 1), jnp.float32),
        grid_spec=pltpu.PrefetchScalarGridSpec(
            num_scalar_prefetch=0,
            grid=(n_steps,),
            in_specs=[
                pl.BlockSpec((B, tk), lambda k: (0, k)),   # activations tile (bf16)
                pl.BlockSpec((tk, H), lambda k: (k, 0)),   # fc1 weight tile (bf16)
                pl.BlockSpec((1, H), lambda k: (0, 0)),    # fc1 bias (resident)
                pl.BlockSpec((1, H), lambda k: (0, 0)),    # fc2 weight row (resident)
                pl.BlockSpec((1, 1), lambda k: (0, 0)),    # fc2 bias (resident)
            ],
            out_specs=pl.BlockSpec((B, 1), lambda k: (0, 0)),
            scratch_shapes=[pltpu.VMEM((B, H), jnp.float32)],
        ),
        compiler_params=pltpu.CompilerParams(
            dimension_semantics=("arbitrary",),
            vmem_limit_bytes=vmem_limit,
        ),
    )(x_bf, w1_bf, b1_2d, w2_row, b2_2d)


def synthetic_opt_logits(input_ids, attention_mask, embed_table, proj):
    """Deterministic stand-in for `self.opt(...).logits[:, -1, :]`.

    # TODO(synk): the pretrained OPT transformer backbone has no clean
    # single-Pallas-kernel equivalent; a last-token embedding + vocab
    # projection is used as a deterministic synthetic surrogate.  For the real
    # model, fc1 could be folded into the unembedding (W_vocab @ W1) so the
    # (B, vocab) logits never need to be materialized.
    """
    del attention_mask  # logits[:, -1, :] is positional, mask unused here
    last_tok = input_ids[:, -1]                     # (B,)
    emb = embed_table[last_tok]                     # (B, hidden)
    return emb @ proj                               # (B, vocab) "logits"


if __name__ == "__main__":
    # Vocab deliberately NOT a multiple of 128 to exercise the padding path
    # (real OPT vocab 50272 is also not tile-aligned).
    B, S, HIDDEN, VOCAB, H = 2, 8, 32, 500, 32

    key = jax.random.PRNGKey(0)
    k_ids, k_emb, k_proj, k_w1, k_b1, k_w2, k_b2 = jax.random.split(key, 7)

    # Inputs matching the module's forward signature.
    input_ids = jax.random.randint(k_ids, (B, S), 0, VOCAB, dtype=jnp.int32)
    attention_mask = jnp.ones((B, S), dtype=jnp.int32)

    # Synthetic OPT stand-in parameters (deterministic).
    embed_table = jax.random.normal(k_emb, (VOCAB, HIDDEN), jnp.float32) * 0.02
    proj = jax.random.normal(k_proj, (HIDDEN, VOCAB), jnp.float32) * 0.02

    # Classifier head parameters: fc1 (vocab -> 32), fc2 (32 -> 1).
    w1 = jax.random.normal(k_w1, (VOCAB, H), jnp.float32) * 0.02
    b1 = jax.random.normal(k_b1, (H,), jnp.float32) * 0.02
    w2 = jax.random.normal(k_w2, (H, 1), jnp.float32) * 0.02
    b2 = jax.random.normal(k_b2, (1,), jnp.float32) * 0.02

    # Forward: synthetic backbone (plain JAX glue) + Pallas classifier head.
    opt_out = synthetic_opt_logits(input_ids, attention_mask, embed_table, proj)
    out = classifier_head(opt_out, w1, b1, w2, b2)
    out = jax.block_until_ready(out)

    # Reference: quantize fc1 operands to bf16 the same way the kernel streams
    # them, then compute in f32 at highest precision.
    x_q = opt_out.astype(jnp.bfloat16).astype(jnp.float32)
    w1_q = w1.astype(jnp.bfloat16).astype(jnp.float32)
    h_ref = jnp.maximum(
        jnp.dot(x_q, w1_q, precision=jax.lax.Precision.HIGHEST) + b1, 0.0
    )
    ref = jnp.dot(h_ref, w2, precision=jax.lax.Precision.HIGHEST) + b2

    assert out.shape == (B, 1)
    assert jnp.allclose(out, ref, atol=1e-4, rtol=1e-3), (out, ref)

    print("KERNEL_OK")
</pallas_src>

<mosaic_0001>
module attributes {stable_mosaic.version = 11 : i64} {
  func.func @classifier_head_kernel(%arg0: i32, %arg1: memref<2x512xbf16, #tpu.memory_space<vmem>>, %arg2: memref<512x32xbf16, #tpu.memory_space<vmem>>, %arg3: memref<1x32xf32, #tpu.memory_space<vmem>>, %arg4: memref<1x32xf32, #tpu.memory_space<vmem>>, %arg5: memref<1x1xf32, #tpu.memory_space<vmem>>, %arg6: memref<2x1xf32, #tpu.memory_space<vmem>>, %arg7: memref<2x32xf32, #tpu.memory_space<vmem>>) attributes {dimension_semantics = [#tpu.dimension_semantics<arbitrary>], iteration_bounds = array<i64: 1>, scalar_prefetch = 0 : i64, scratch_operands = 1 : i64, tpu.core_type = #tpu.core_type<tc>, window_params = [{transform_indices = @transform_0, window_bounds = array<i64: 2, 512>}, {transform_indices = @transform_1, window_bounds = array<i64: 512, 32>}, {pipeline_mode = #tpu.pipeline_mode<synchronous>, transform_indices = @transform_2, window_bounds = array<i64: 1, 32>}, {pipeline_mode = #tpu.pipeline_mode<synchronous>, transform_indices = @transform_3, window_bounds = array<i64: 1, 32>}, {pipeline_mode = #tpu.pipeline_mode<synchronous>, transform_indices = @transform_4, window_bounds = array<i64: 1, 1>}, {pipeline_mode = #tpu.pipeline_mode<synchronous>, transform_indices = @transform_5, window_bounds = array<i64: 2, 1>}]} {
    %c0_i32 = arith.constant 0 : i32
    %0 = arith.cmpi eq, %arg0, %c0_i32 : i32
    %1 = arith.extui %0 : i1 to i32
    %c0_i32_0 = arith.constant 0 : i32
    %2 = arith.cmpi ne, %1, %c0_i32_0 : i32
    scf.if %2 {
      %cst_10 = arith.constant 0.000000e+00 : f32
      %12 = vector.broadcast %cst_10 : f32 to vector<2x32xf32>
      %c0_11 = arith.constant 0 : index
      %c0_12 = arith.constant 0 : index
      %13 = vector.load %arg7[%c0_11, %c0_12] : memref<2x32xf32, #tpu.memory_space<vmem>>, vector<2x32xf32>
      tpu.vector_store %arg7[%c0_11, %c0_12], %12 {strides = array<i32>} : memref<2x32xf32, #tpu.memory_space<vmem>>, vector<2x32xf32>,
    } else {
    }
    %c0 = arith.constant 0 : index
    %c0_1 = arith.constant 0 : index
    %3 = vector.load %arg7[%c0, %c0_1] : memref<2x32xf32, #tpu.memory_space<vmem>>, vector<2x32xf32>
    %c0_2 = arith.constant 0 : index
    %c0_3 = arith.constant 0 : index
    %4 = vector.load %arg1[%c0_2, %c0_3] : memref<2x512xbf16, #tpu.memory_space<vmem>>, vector<2x512xbf16>
    %c0_4 = arith.constant 0 : index
    %c0_5 = arith.constant 0 : index
    %5 = vector.load %arg2[%c0_4, %c0_5] : memref<512x32xbf16, #tpu.memory_space<vmem>>, vector<512x32xbf16>
    %cst = arith.constant dense<0.000000e+00> : vector<2x32xf32>
    %6 = tpu.matmul %4, %5, %cst {dimension_numbers = #tpu.dot_dimension_numbers<[1], [0], [0], [1], [0, 0, 1, 1], [], []>} : vector<2x512xbf16>, vector<512x32xbf16>, vector<2x32xf32> -> vector<2x32xf32>
    %7 = arith.addf %3, %6 : vector<2x32xf32>
    %c0_6 = arith.constant 0 : index
    %c0_7 = arith.constant 0 : index
    %8 = vector.load %arg7[%c0_6, %c0_7] : memref<2x32xf32, #tpu.memory_space<vmem>>, vector<2x32xf32>
    tpu.vector_store %arg7[%c0_6, %c0_7], %7 {strides = array<i32>} : memref<2x32xf32, #tpu.memory_space<vmem>>, vector<2x32xf32>,
    %c0_i32_8 = arith.constant 0 : i32
    %9 = arith.cmpi eq, %arg0, %c0_i32_8 : i32
    %10 = arith.extui %9 : i1 to i32
    %c0_i32_9 = arith.constant 0 : i32
    %11 = arith.cmpi ne, %10, %c0_i32_9 : i32
    scf.if %11 {
      %c0_10 = arith.constant 0 : index
      %c0_11 = arith.constant 0 : index
      %12 = vector.load %arg7[%c0_10, %c0_11] : memref<2x32xf32, #tpu.memory_space<vmem>>, vector<2x32xf32>
      %c0_12 = arith.constant 0 : index
      %c0_13 = arith.constant 0 : index
      %13 = vector.load %arg3[%c0_12, %c0_13] : memref<1x32xf32, #tpu.memory_space<vmem>>, vector<1x32xf32>
      %14 = vector.broadcast %13 : vector<1x32xf32> to vector<2x32xf32>
      %15 = arith.addf %12, %14 : vector<2x32xf32>
      %cst_14 = arith.constant 0.000000e+00 : f32
      %16 = vector.broadcast %cst_14 : f32 to vector<2x32xf32>
      %17 = arith.maximumf %15, %16 : vector<2x32xf32>
      %c0_15 = arith.constant 0 : index
      %c0_16 = arith.constant 0 : index
      %18 = vector.load %arg4[%c0_15, %c0_16] : memref<1x32xf32, #tpu.memory_space<vmem>>, vector<1x32xf32>
      %19 = vector.broadcast %18 : vector<1x32xf32> to vector<2x32xf32>
      %20 = arith.mulf %17, %19 : vector<2x32xf32>
      %cst_17 = arith.constant dense<0.000000e+00> : vector<2xf32>
      %21 = vector.multi_reduction <add>, %20, %cst_17 [1] : vector<2x32xf32> to vector<2xf32>
      %22 = vector.shape_cast %21 : vector<2xf32> to vector<2x1xf32>
      %c0_18 = arith.constant 0 : index
      %c0_19 = arith.constant 0 : index
      %23 = vector.load %arg5[%c0_18, %c0_19] : memref<1x1xf32, #tpu.memory_space<vmem>>, vector<1x1xf32>
      %24 = vector.broadcast %23 : vector<1x1xf32> to vector<2x1xf32>
      %25 = arith.addf %22, %24 : vector<2x1xf32>
      %c0_20 = arith.constant 0 : index
      %c0_21 = arith.constant 0 : index
      %26 = vector.load %arg6[%c0_20, %c0_21] : memref<2x1xf32, #tpu.memory_space<vmem>>, vector<2x1xf32>
      tpu.vector_store %arg6[%c0_20, %c0_21], %25 {strides = array<i32>} : memref<2x1xf32, #tpu.memory_space<vmem>>, vector<2x1xf32>,
    } else {
    }
    return
  }
  func.func @transform_0(%arg0: i32) -> (i32, i32) {
    %c0_i32 = arith.constant 0 : i32
    %c0_i32_0 = arith.constant 0 : i32
    return %c0_i32, %arg0 : i32, i32
  }
  func.func @transform_1(%arg0: i32) -> (i32, i32) {
    %c0_i32 = arith.constant 0 : i32
    %c0_i32_0 = arith.constant 0 : i32
    return %arg0, %c0_i32 : i32, i32
  }
  func.func @transform_2(%arg0: i32) -> (i32, i32) {
    %c0_i32 = arith.constant 0 : i32
    %c0_i32_0 = arith.constant 0 : i32
    %c0_i32_1 = arith.constant 0 : i32
    return %c0_i32, %c0_i32_0 : i32, i32
  }
  func.func @transform_3(%arg0: i32) -> (i32, i32) {
    %c0_i32 = arith.constant 0 : i32
    %c0_i32_0 = arith.constant 0 : i32
    %c0_i32_1 = arith.constant 0 : i32
    return %c0_i32, %c0_i32_0 : i32, i32
  }
  func.func @transform_4(%arg0: i32) -> (i32, i32) {
    %c0_i32 = arith.constant 0 : i32
    %c0_i32_0 = arith.constant 0 : i32
    %c0_i32_1 = arith.constant 0 : i32
    return %c0_i32, %c0_i32_0 : i32, i32
  }
  func.func @transform_5(%arg0: i32) -> (i32, i32) {
    %c0_i32 = arith.constant 0 : i32
    %c0_i32_0 = arith.constant 0 : i32
    %c0_i32_1 = arith.constant 0 : i32
    return %c0_i32, %c0_i32_0 : i32, i32
  }
}

</mosaic_0001>

<llo_original>
// kernel: tpu_custom_call.1
$region0: #{tpu_custom_call.1}
  #allocation0 [shape = 'u32[]', space=smem, size = 0x4, offset = 0x4, fixed_abs, tag = 'smem constant byte address 0x4 - core index']
  #allocation1 [shape = 'u32[72,128]{1,0:T(1,128)}', space=vmem, size = 0x9000, scoped, tag = 'internal scratch']
  #allocation2 [shape = 'f32[2,32]{1,0:T(2,128)}', space=vmem, size = 0x400, scoped, tag = 'scratch operand']
  #allocation3 [shape = 'f32[1,1]{1,0:T(1,128)S(1)}', space=vmem, size = 0x200, scoped, tag = 'scoped memory for tpu_custom_call.1']
  %s0 = inlined_call_operand.vmem [shape: bf16[2,512], index: 0, kind: input, shape index: {}]
  %s1 = inlined_call_operand.vmem [shape: bf16[512,32], index: 1, kind: input, shape index: {}]
  %s2 = inlined_call_operand.vmem [shape: f32[1,32], index: 2, kind: input, shape index: {}]
  %s3 = inlined_call_operand.vmem [shape: f32[1,32], index: 3, kind: input, shape index: {}]
  %s4 = inlined_call_operand.<no memory space> [shape: f32[1,1], index: 4, kind: input, shape index: {}]
  %s5 = inlined_call_operand.vmem [shape: f32[2,1], index: 5, kind: output, shape index: {}]
  %s6 = sld [smem:[#allocation0]]
  $region38: #{tpu_custom_call.1} parent=0
    _
  %s8 = ssub.s32 1, %s6
  %s9 = scalar_select 0, %s8, %s6
  %v10 = vstv %s4
  %11 = vst [vmem:[#allocation3] sm:$0x1] %v10
  // Predicated region
  $region2: #{tpu_custom_call.1} parent=0 // pred_check
    _
  $region3: #{tpu_custom_call.1} parent=0 // pred_check_branch
    %13 = sbr.rel (0) target = $region5
  $region4: #{tpu_custom_call.1} parent=0 // pred_region
    _
  $region5: #{tpu_custom_call.1} parent=0 // pred_fallthru
    _
  // Predicated region
  $region6: #{tpu_custom_call.1} parent=0 // pred_check
    _
  $region7: #{tpu_custom_call.1} parent=0 // pred_check_branch
    %15 = sbr.rel (0) target = $region9
  $region8: #{tpu_custom_call.1} parent=0 // pred_region
    _
  $region9: #{tpu_custom_call.1} parent=0 // pred_fallthru
    _
  // Predicated region
  $region10: #{tpu_custom_call.1} parent=0 // pred_check
    _
  $region11: #{tpu_custom_call.1} parent=0 // pred_check_branch
    %17 = sbr.rel (0) target = $region13
  $region12: #{tpu_custom_call.1} parent=0 // pred_region
    _
  $region13: #{tpu_custom_call.1} parent=0 // pred_fallthru
    _
  // Predicated region
  $region14: #{tpu_custom_call.1} parent=0 // pred_check
    _
  $region15: #{tpu_custom_call.1} parent=0 // pred_check_branch
    %19 = sbr.rel (0) target = $region17
  $region16: #{tpu_custom_call.1} parent=0 // pred_region
    _
  $region17: #{tpu_custom_call.1} parent=0 // pred_fallthru
    _
  // Predicated region
  $region18: #{tpu_custom_call.1} parent=0 // pred_check
    _
  $region19: #{tpu_custom_call.1} parent=0 // pred_check_branch
    %21 = sbr.rel (0) target = $region21
  $region20: #{tpu_custom_call.1} parent=0 // pred_region
    _
  $region21: #{tpu_custom_call.1} parent=0 // pred_fallthru
    _
  %p22 = scmp.eq.s32.totalorder 0, 0
  // Predicated region
  $region22: #{tpu_custom_call.1} parent=0 // pred_check
    %p23 = pneg %p22
  $region23: #{tpu_custom_call.1} parent=0 // pred_check_branch
    %25 = sbr.rel (%p23) target = $region25
  $region24: #{tpu_custom_call.1} parent=0 // pred_region
    %vm26 = vcmask 254976
    %27 = vst.msk [vmem:[#allocation2] sm:$0x3] %vm26, 0.0
  $region25: #{tpu_custom_call.1} parent=0 // pred_fallthru
    _
  %v28 = vld [vmem:[#allocation2] sm:$0x3]
  %v29 = vld [vmem:[%s0] sm:$0xf]
  %v30 = vld [vmem:[%s1] sm:$0xf]
  %v31 = vld [vmem:[%s1 + $0x4] sm:$0xf]
  %v32 = vld [vmem:[%s1 + $0x8] sm:$0xf]
  %v33 = vld [vmem:[%s1 + $0xc] sm:$0xf]
  %v34 = vld [vmem:[%s1 + $0x10] sm:$0xf]
  %v35 = vld [vmem:[%s1 + $0x14] sm:$0xf]
  %v36 = vld [vmem:[%s1 + $0x18] sm:$0xf]
  %v37 = vld [vmem:[%s1 + $0x1c] sm:$0xf]
  %v38 = vld [vmem:[%s1 + $0x20] sm:$0xf]
  %v39 = vld [vmem:[%s1 + $0x24] sm:$0xf]
  %v40 = vld [vmem:[%s1 + $0x28] sm:$0xf]
  %v41 = vld [vmem:[%s1 + $0x2c] sm:$0xf]
  %v42 = vld [vmem:[%s1 + $0x30] sm:$0xf]
  %v43 = vld [vmem:[%s1 + $0x34] sm:$0xf]
  %v44 = vld [vmem:[%s1 + $0x38] sm:$0xf]
  %v45 = vld [vmem:[%s1 + $0x3c] sm:$0xf]
  %v46 = vld [vmem:[%s1 + $0x40] sm:$0xf]
  %v47 = vld [vmem:[%s1 + $0x44] sm:$0xf]
  %v48 = vld [vmem:[%s1 + $0x48] sm:$0xf]
  %v49 = vld [vmem:[%s1 + $0x4c] sm:$0xf]
  %v50 = vld [vmem:[%s1 + $0x50] sm:$0xf]
  %v51 = vld [vmem:[%s1 + $0x54] sm:$0xf]
  %v52 = vld [vmem:[%s1 + $0x58] sm:$0xf]
  %v53 = vld [vmem:[%s1 + $0x5c] sm:$0xf]
  %v54 = vld [vmem:[%s1 + $0x60] sm:$0xf]
  %v55 = vld [vmem:[%s1 + $0x64] sm:$0xf]
  %v56 = vld [vmem:[%s1 + $0x68] sm:$0xf]
  %v57 = vld [vmem:[%s1 + $0x6c] sm:$0xf]
  %v58 = vld [vmem:[%s1 + $0x70] sm:$0xf]
  %v59 = vld [vmem:[%s1 + $0x74] sm:$0xf]
  %v60 = vld [vmem:[%s1 + $0x78] sm:$0xf]
  %v61 = vld [vmem:[%s1 + $0x7c] sm:$0xf]
  %v62 = vld [vmem:[%s1 + $0x80] sm:$0xf]
  %v63 = vld [vmem:[%s1 + $0x84] sm:$0xf]
  %v64 = vld [vmem:[%s1 + $0x88] sm:$0xf]
  %v65 = vld [vmem:[%s1 + $0x8c] sm:$0xf]
  %v66 = vld [vmem:[%s1 + $0x90] sm:$0xf]
  %v67 = vld [vmem:[%s1 + $0x94] sm:$0xf]
  %v68 = vld [vmem:[%s1 + $0x98] sm:$0xf]
  %v69 = vld [vmem:[%s1 + $0x9c] sm:$0xf]
  %v70 = vld [vmem:[%s1 + $0xa0] sm:$0xf]
  %v71 = vld [vmem:[%s1 + $0xa4] sm:$0xf]
  %v72 = vld [vmem:[%s1 + $0xa8] sm:$0xf]
  %v73 = vld [vmem:[%s1 + $0xac] sm:$0xf]
  %v74 = vld [vmem:[%s1 + $0xb0] sm:$0xf]
  %v75 = vld [vmem:[%s1 + $0xb4] sm:$0xf]
  %v76 = vld [vmem:[%s1 + $0xb8] sm:$0xf]
  %v77 = vld [vmem:[%s1 + $0xbc] sm:$0xf]
  %v78 = vld [vmem:[%s1 + $0xc0] sm:$0xf]
  %v79 = vld [vmem:[%s1 + $0xc4] sm:$0xf]
  %v80 = vld [vmem:[%s1 + $0xc8] sm:$0xf]
  %v81 = vld [vmem:[%s1 + $0xcc] sm:$0xf]
  %v82 = vld [vmem:[%s1 + $0xd0] sm:$0xf]
  %v83 = vld [vmem:[%s1 + $0xd4] sm:$0xf]
  %v84 = vld [vmem:[%s1 + $0xd8] sm:$0xf]
  %v85 = vld [vmem:[%s1 + $0xdc] sm:$0xf]
  %v86 = vld [vmem:[%s1 + $0xe0] sm:$0xf]
  %v87 = vld [vmem:[%s1 + $0xe4] sm:$0xf]
  %v88 = vld [vmem:[%s1 + $0xe8] sm:$0xf]
  %v89 = vld [vmem:[%s1 + $0xec] sm:$0xf]
  %v90 = vld [vmem:[%s1 + $0xf0] sm:$0xf]
  %v91 = vld [vmem:[%s1 + $0xf4] sm:$0xf]
  %v92 = vld [vmem:[%s1 + $0xf8] sm:$0xf]
  %v93 = vld [vmem:[%s1 + $0xfc] sm:$0xf]
  %95 = vst [vmem:[#allocation1] ss:$9 sm:$0xff] %v29
  %v96 = vld [vmem:[#allocation1] sm:$0xff]
  %v97 = vld [vmem:[#allocation1 + $0x9] sm:$0xff]
  %v98 = vld [vmem:[#allocation1 + $0x12] sm:$0xff]
  %v99 = vld [vmem:[#allocation1 + $0x1b] sm:$0xff]
  %v168 = vunpack.c.l.b16 %v30
  %v169 = vunpack.c.l.b16 %v31
  %v170 = vunpack.c.l.b16 %v32
  %v171 = vunpack.c.l.b16 %v33
  %v172 = vunpack.c.l.b16 %v34
  %v173 = vunpack.c.l.b16 %v35
  %v174 = vunpack.c.l.b16 %v36
  %v175 = vunpack.c.l.b16 %v37
  %v176 = vunpack.c.l.b16 %v38
  %v177 = vunpack.c.l.b16 %v39
  %v178 = vunpack.c.l.b16 %v40
  %v179 = vunpack.c.l.b16 %v41
  %v180 = vunpack.c.l.b16 %v42
  %v181 = vunpack.c.l.b16 %v43
  %v182 = vunpack.c.l.b16 %v44
  %v183 = vunpack.c.l.b16 %v45
  %v184 = vunpack.c.l.b16 %v46
  %v185 = vunpack.c.l.b16 %v47
  %v186 = vunpack.c.l.b16 %v48
  %v187 = vunpack.c.l.b16 %v49
  %v188 = vunpack.c.l.b16 %v50
  %v189 = vunpack.c.l.b16 %v51
  %v190 = vunpack.c.l.b16 %v52
  %v191 = vunpack.c.l.b16 %v53
  %v192 = vunpack.c.l.b16 %v54
  %v193 = vunpack.c.l.b16 %v55
  %v194 = vunpack.c.l.b16 %v56
  %v195 = vunpack.c.l.b16 %v57
  %v196 = vunpack.c.l.b16 %v58
  %v197 = vunpack.c.l.b16 %v59
  %v198 = vunpack.c.l.b16 %v60
  %v199 = vunpack.c.l.b16 %v61
  %v200 = vunpack.c.l.b16 %v62
  %v201 = vunpack.c.l.b16 %v63
  %v202 = vunpack.c.l.b16 %v64
  %v203 = vunpack.c.l.b16 %v65
  %v204 = vunpack.c.l.b16 %v66
  %v205 = vunpack.c.l.b16 %v67
  %v206 = vunpack.c.l.b16 %v68
  %v207 = vunpack.c.l.b16 %v69
  %v208 = vunpack.c.l.b16 %v70
  %v209 = vunpack.c.l.b16 %v71
  %v210 = vunpack.c.l.b16 %v72
  %v211 = vunpack.c.l.b16 %v73
  %v212 = vunpack.c.l.b16 %v74
  %v213 = vunpack.c.l.b16 %v75
  %v214 = vunpack.c.l.b16 %v76
  %v215 = vunpack.c.l.b16 %v77
  %v216 = vunpack.c.l.b16 %v78
  %v217 = vunpack.c.l.b16 %v79
  %v218 = vunpack.c.l.b16 %v80
  %v219 = vunpack.c.l.b16 %v81
  %v220 = vunpack.c.l.b16 %v82
  %v221 = vunpack.c.l.b16 %v83
  %v222 = vunpack.c.l.b16 %v84
  %v223 = vunpack.c.l.b16 %v85
  %v224 = vunpack.c.l.b16 %v86
  %v225 = vunpack.c.l.b16 %v87
  %v226 = vunpack.c.l.b16 %v88
  %v227 = vunpack.c.l.b16 %v89
  %v228 = vunpack.c.l.b16 %v90
  %v229 = vunpack.c.l.b16 %v91
  %v230 = vunpack.c.l.b16 %v92
  %v231 = vunpack.c.l.b16 %v93
  %v232 = vpack.c.b16 %v169, %v168
  %v233 = vpack.c.b16 %v171, %v170
  %v234 = vpack.c.b16 %v173, %v172
  %v235 = vpack.c.b16 %v175, %v174
  %v236 = vpack.c.b16 %v177, %v176
  %v237 = vpack.c.b16 %v179, %v178
  %v238 = vpack.c.b16 %v181, %v180
  %v239 = vpack.c.b16 %v183, %v182
  %v240 = vpack.c.b16 %v185, %v184
  %v241 = vpack.c.b16 %v187, %v186
  %v242 = vpack.c.b16 %v189, %v188
  %v243 = vpack.c.b16 %v191, %v190
  %v244 = vpack.c.b16 %v193, %v192
  %v245 = vpack.c.b16 %v195, %v194
  %v246 = vpack.c.b16 %v197, %v196
  %v247 = vpack.c.b16 %v199, %v198
  %v248 = vpack.c.b16 %v201, %v200
  %v249 = vpack.c.b16 %v203, %v202
  %v250 = vpack.c.b16 %v205, %v204
  %v251 = vpack.c.b16 %v207, %v206
  %v252 = vpack.c.b16 %v209, %v208
  %v253 = vpack.c.b16 %v211, %v210
  %v254 = vpack.c.b16 %v213, %v212
  %v255 = vpack.c.b16 %v215, %v214
  %v256 = vpack.c.b16 %v217, %v216
  %v257 = vpack.c.b16 %v219, %v218
  %v258 = vpack.c.b16 %v221, %v220
  %v259 = vpack.c.b16 %v223, %v222
  %v260 = vpack.c.b16 %v225, %v224
  %v261 = vpack.c.b16 %v227, %v226
  %v262 = vpack.c.b16 %v229, %v228
  %v263 = vpack.c.b16 %v231, %v230
  %296 = vmatpush.bf16.msra.mxu0 %v239
  %297 = vmatpush.bf16.msra.mxu0 %v238
  %298 = vmatpush.bf16.msra.mxu0 %v237
  %299 = vmatpush.bf16.msra.mxu0 %v236
  %300 = vmatpush.bf16.msra.mxu0 %v235
  %301 = vmatpush.bf16.msra.mxu0 %v234
  %302 = vmatpush.bf16.msra.mxu0 %v233
  %303 = vmatpush.bf16.msra.mxu0 %v232
  %304 = vmatmul.bf16.gmra.mxu0 %v96
  %v305 = vpop.f32.mrf.mxu0
  %v306 = vadd.f32 0.0, %v305
  %v307 = vpop.f32.mrf.mxu0
  %308 = vdwg.mxu0
  %309 = vmatpush.bf16.msra.mxu0 %v247
  %310 = vmatpush.bf16.msra.mxu0 %v246
  %311 = vmatpush.bf16.msra.mxu0 %v245
  %312 = vmatpush.bf16.msra.mxu0 %v244
  %313 = vmatpush.bf16.msra.mxu0 %v243
  %314 = vmatpush.bf16.msra.mxu0 %v242
  %315 = vmatpush.bf16.msra.mxu0 %v241
  %316 = vmatpush.bf16.msra.mxu0 %v240
  %317 = vmatmul.bf16.gmra.mxu0 %v97
  %v318 = vpop.f32.mrf.mxu0
  %v319 = vadd.f32 %v306, %v318
  %v320 = vpop.f32.mrf.mxu0
  %321 = vdwg.mxu0
  %322 = vmatpush.bf16.msra.mxu0 %v255
  %323 = vmatpush.bf16.msra.mxu0 %v254
  %324 = vmatpush.bf16.msra.mxu0 %v253
  %325 = vmatpush.bf16.msra.mxu0 %v252
  %326 = vmatpush.bf16.msra.mxu0 %v251
  %327 = vmatpush.bf16.msra.mxu0 %v250
  %328 = vmatpush.bf16.msra.mxu0 %v249
  %329 = vmatpush.bf16.msra.mxu0 %v248
  %330 = vmatmul.bf16.gmra.mxu0 %v98
  %v331 = vpop.f32.mrf.mxu0
  %v332 = vadd.f32 %v319, %v331
  %v333 = vpop.f32.mrf.mxu0
  %334 = vdwg.mxu0
  %335 = vmatpush.bf16.msra.mxu0 %v263
  %336 = vmatpush.bf16.msra.mxu0 %v262
  %337 = vmatpush.bf16.msra.mxu0 %v261
  %338 = vmatpush.bf16.msra.mxu0 %v260
  %339 = vmatpush.bf16.msra.mxu0 %v259
  %340 = vmatpush.bf16.msra.mxu0 %v258
  %341 = vmatpush.bf16.msra.mxu0 %v257
  %342 = vmatpush.bf16.msra.mxu0 %v256
  %343 = vmatmul.bf16.gmra.mxu0 %v99
  %v344 = vpop.f32.mrf.mxu0
  %v345 = vadd.f32 %v332, %v344
  %v346 = vpop.f32.mrf.mxu0
  %347 = vdwg.mxu0
  %v348 = vadd.f32 %v28, %v345
  %vm349 = vcmask 254976
  %350 = vst.msk [vmem:[#allocation2] sm:$0x3] %vm349, %v348
  // Predicated region
  $region26: #{tpu_custom_call.1} parent=0 // pred_check
    %p351 = pneg %p22
  $region27: #{tpu_custom_call.1} parent=0 // pred_check_branch
    %353 = sbr.rel (%p351) target = $region29
  $region28: #{tpu_custom_call.1} parent=0 // pred_region
    %v354 = vld [vmem:[#allocation2] sm:$0x3]
    %v355 = vld [vmem:[%s2] sm:$0x1]
    %v357 = vperm.slane %v355, 0
    %v359 = vadd.f32 %v354, %v357
    %v360 = vmax.f32 %v359, 0.0
    %v361 = vld [vmem:[%s3] sm:$0x1]
    %v363 = vperm.slane %v361, 0
    %v365 = vmul.f32 %v360, %v363
    %v366 = vsel %vm349, %v365, 0.0
    %367 = vadd.xlane.f32.xlu0 %v366
    %v368 = vpop.xlane.xlu0 %367
    %v369 = vld [vmem:[#allocation3] sm:$0x1]
    %v371 = vperm.slane %v369, 0
    %v373 = vadd.f32 %v368, %v371
    %vm374 = vcmask 1024
    %375 = vst.msk [vmem:[%s5] sm:$0x3] %vm374, %v373
  $region29: #{tpu_custom_call.1} parent=0 // pred_fallthru
    _
  // Predicated region
  $region30: #{tpu_custom_call.1} parent=0 // pred_check
    _
  $region31: #{tpu_custom_call.1} parent=0 // pred_check_branch
    %377 = sbr.rel (0) target = $region33
  $region32: #{tpu_custom_call.1} parent=0 // pred_region
    _
  $region33: #{tpu_custom_call.1} parent=0 // pred_fallthru
    _
  // Predicated region
  $region34: #{tpu_custom_call.1} parent=0 // pred_check
    _
  $region35: #{tpu_custom_call.1} parent=0 // pred_check_branch
    %379 = sbr.rel (0) target = $region37
  $region36: #{tpu_custom_call.1} parent=0 // pred_region
    _
  $region37: #{tpu_custom_call.1} parent=0 // pred_fallthru
    _

</llo_original>
